<compile_context>
chip_gen: v6e
topology: v6e:2x2x1
jax: 0.10.0
libtpu: 0.0.40
codegen_flags: <defaults>
</compile_context>

<pallas_src>
import jax
import jax.numpy as jnp
from jax.experimental import pallas as pl
from jax.experimental.pallas import tpu as pltpu


def make_kernel(C_out, KH, W, DIL, HW, L):
    PAD = L - HW

    def kernel(x_ref, wb_ref, o_ref):
        # x_ref : (NB, HW)              f32 VMEM  -- NB samples, row-major flattened (H*W)
        # wb_ref: (C_out*KH + C_out,)   f32 SMEM  -- [w[c,kh] c-major, kh-minor ; then b[c]]
        # o_ref : (NB, C_out*L)         f32 VMEM  -- lane-dense slab, channel c at lanes [c*L, (c+1)*L)
        x = x_ref[...]                                               # (NB, HW)
        # In-kernel zero pad to L lanes so the cyclic roll wrap lands in zeros.
        xp = jnp.concatenate(
            [x, jnp.zeros((x.shape[0], PAD), jnp.float32)], axis=1)  # (NB, L)

        # Dilated transposed-conv row shifts == static lane shifts (XLU), shared by all channels.
        taps = [xp] + [pltpu.roll(xp, shift=DIL * kh * W, axis=1) for kh in range(1, KH)]

        for c in range(C_out):
            acc = taps[0] * wb_ref[c * KH + 0]
            for kh in range(1, KH):
                acc = acc + taps[kh] * wb_ref[c * KH + kh]
            acc = acc + wb_ref[C_out * KH + c]                       # + bias[c]
            # Lane-dense, 128-aligned store (c*L is a static multiple of 128).
            o_ref[:, pl.ds(c * L, L)] = jnp.tanh(acc)

    return kernel


def conv_transpose_tanh_slab(x, w, b, *, dilation=2):
    """x: (N, 1, H, W) f32, w: (1, C_out, KH, 1) f32, b: (C_out,) f32.
    Returns the lane-dense slab (N, C_out*L) with the valid output occupying
    lanes [c*L, c*L + H_out*W) per channel; lanes beyond that are padding.
    Equivalent (after slab_to_nchw) to tanh(nn.ConvTranspose2d(1, C_out, (KH, 1), dilation=2)(x))."""
    N, C_in, H, W = x.shape
    assert C_in == 1 and w.shape[0] == 1 and w.shape[3] == 1, "lane-shift trick assumes C_in=1, kW=1"
    C_out, KH = w.shape[1], w.shape[2]
    DIL = dilation
    H_out = H + DIL * (KH - 1)                 # 20
    HW = H * W                                 # 128
    HW_out = H_out * W                         # 160
    L = ((HW_out + 127) // 128) * 128          # 256 (lane-aligned)
    # Trailing zeros must cover the largest roll so the cyclic wrap contributes 0.
    assert L - HW >= DIL * (KH - 1) * W

    x2 = x.reshape(N, HW).astype(jnp.float32)  # free reshape, no padding in the wrapper
    # Pack weights (c-major, kh-minor) and bias into one tiny SMEM array.
    wb = jnp.concatenate([w[0, :, :, 0].reshape(-1), b]).astype(jnp.float32)

    # Batch block: fill sublanes (8 samples) when possible; otherwise a single full block.
    NB = 8 if (N % 8 == 0) else N
    grid = (N // NB,)

    slab = pl.pallas_call(
        make_kernel(C_out, KH, W, DIL, HW, L),
        out_shape=jax.ShapeDtypeStruct((N, C_out * L), jnp.float32),
        grid=grid,
        in_specs=[
            pl.BlockSpec((NB, HW), lambda i: (i, 0)),
            pl.BlockSpec(memory_space=pltpu.MemorySpace.SMEM),
        ],
        out_specs=pl.BlockSpec((NB, C_out * L), lambda i: (i, 0)),
        compiler_params=pltpu.CompilerParams(dimension_semantics=("parallel",)),
    )(x2, wb)
    return slab, (C_out, H_out, W, L)


def slab_to_nchw(slab, C_out, H_out, W, L):
    """Consumer-side conversion of the lane-dense slab to NCHW.
    Kept out of the kernel wrapper so it can be fused into the next op instead."""
    N = slab.shape[0]
    return slab.reshape(N, C_out, L)[:, :, :H_out * W].reshape(N, C_out, H_out, W)


def _reference(x, w, b):
    """Pure-JAX reference: tanh(ConvTranspose2d(1, 2, (3,1), dilation=2)(x))."""
    N = x.shape[0]
    C_out, KH = w.shape[1], w.shape[2]
    H, W = x.shape[2], x.shape[3]
    H_out = H + 2 * (KH - 1)
    w2d = w[0, :, :, 0]
    ref = jnp.broadcast_to(b[:, None, None], (C_out, H_out, W)).astype(jnp.float32)
    ref = jnp.broadcast_to(ref[None], (N, C_out, H_out, W))
    for kh in range(KH):
        ref = ref.at[:, :, 2 * kh:2 * kh + H, :].add(
            w2d[None, :, kh, None, None] * x[:, 0:1])
    return jnp.tanh(ref)


if __name__ == "__main__":
    key = jax.random.PRNGKey(0)
    kx, kw, kb, kxb = jax.random.split(key, 4)

    # Input matching the module: (1, 1, 16, 8)
    x = jax.random.normal(kx, (1, 1, 16, 8), dtype=jnp.float32)

    # ConvTranspose2d(1, 2, (3, 1), dilation=2) parameters:
    # weight (C_in=1, C_out=2, kH=3, kW=1), bias (2,)
    fan_in = 1 * 3 * 1
    bound = 1.0 / (fan_in ** 0.5)
    w = jax.random.uniform(kw, (1, 2, 3, 1), jnp.float32, -bound, bound)
    b = jax.random.uniform(kb, (2,), jnp.float32, -bound, bound)

    slab, (C_out, H_out, W_, L) = conv_transpose_tanh_slab(x, w, b)
    y = slab_to_nchw(slab, C_out, H_out, W_, L)
    jax.block_until_ready(y)

    ref = _reference(x, w, b)
    assert y.shape == (1, 2, 20, 8), y.shape
    assert jnp.allclose(y, ref, atol=1e-5, rtol=1e-5), float(jnp.max(jnp.abs(y - ref)))

    # Batched path: 16 samples -> grid=(2,) blocks of 8, "parallel" (v7x megacore shards it).
    xb = jax.random.normal(kxb, (16, 1, 16, 8), dtype=jnp.float32)
    slab_b, _ = conv_transpose_tanh_slab(xb, w, b)
    yb = slab_to_nchw(slab_b, C_out, H_out, W_, L)
    jax.block_until_ready(yb)
    ref_b = _reference(xb, w, b)
    assert yb.shape == (16, 2, 20, 8), yb.shape
    assert jnp.allclose(yb, ref_b, atol=1e-5, rtol=1e-5), float(jnp.max(jnp.abs(yb - ref_b)))

    print("KERNEL_OK")
</pallas_src>

<mosaic_0001>
module attributes {stable_mosaic.version = 11 : i64} {
  func.func @kernel(%arg0: i32, %arg1: memref<1x128xf32, #tpu.memory_space<vmem>>, %arg2: memref<8xf32, #tpu.memory_space<smem>>, %arg3: memref<1x512xf32, #tpu.memory_space<vmem>>) attributes {dimension_semantics = [#tpu.dimension_semantics<parallel>], iteration_bounds = array<i64: 1>, scalar_prefetch = 0 : i64, scratch_operands = 0 : i64, tpu.core_type = #tpu.core_type<tc>, window_params = [{transform_indices = @transform_0, window_bounds = array<i64: 1, 128>}, {transform_indices = @transform_1, window_bounds = array<i64: 8>}, {transform_indices = @transform_2, window_bounds = array<i64: 1, 512>}]} {
    %c0 = arith.constant 0 : index
    %c0_0 = arith.constant 0 : index
    %0 = vector.load %arg1[%c0, %c0_0] : memref<1x128xf32, #tpu.memory_space<vmem>>, vector<1x128xf32>
    %cst = arith.constant 0.000000e+00 : f32
    %1 = vector.broadcast %cst : f32 to vector<1x128xf32>
    %2 = tpu.concatenate %0, %1 in 1 : vector<1x128xf32>, vector<1x128xf32> -> vector<1x256xf32>
    %c16_i32 = arith.constant 16 : i32
    %3 = tpu.dynamic_rotate %2 by %c16_i32 dim 1 : vector<1x256xf32>, i32 -> vector<1x256xf32>
    %c32_i32 = arith.constant 32 : i32
    %4 = tpu.dynamic_rotate %2 by %c32_i32 dim 1 : vector<1x256xf32>, i32 -> vector<1x256xf32>
    %c0_1 = arith.constant 0 : index
    %5 = memref.load %arg2[%c0_1] : memref<8xf32, #tpu.memory_space<smem>>
    %6 = vector.broadcast %5 : f32 to vector<1x256xf32>
    %7 = arith.mulf %2, %6 : vector<1x256xf32>
    %c1 = arith.constant 1 : index
    %8 = memref.load %arg2[%c1] : memref<8xf32, #tpu.memory_space<smem>>
    %9 = vector.broadcast %8 : f32 to vector<1x256xf32>
    %10 = arith.mulf %3, %9 : vector<1x256xf32>
    %11 = arith.addf %7, %10 : vector<1x256xf32>
    %c2 = arith.constant 2 : index
    %12 = memref.load %arg2[%c2] : memref<8xf32, #tpu.memory_space<smem>>
    %13 = vector.broadcast %12 : f32 to vector<1x256xf32>
    %14 = arith.mulf %4, %13 : vector<1x256xf32>
    %15 = arith.addf %11, %14 : vector<1x256xf32>
    %c6 = arith.constant 6 : index
    %16 = memref.load %arg2[%c6] : memref<8xf32, #tpu.memory_space<smem>>
    %17 = vector.broadcast %16 : f32 to vector<1x256xf32>
    %18 = arith.addf %15, %17 : vector<1x256xf32>
    %19 = math.tanh %18 : vector<1x256xf32>
    %c0_2 = arith.constant 0 : index
    %c0_3 = arith.constant 0 : index
    %20 = vector.load %arg3[%c0_2, %c0_3] : memref<1x512xf32, #tpu.memory_space<vmem>>, vector<1x256xf32>
    tpu.vector_store %arg3[%c0_2, %c0_3], %19 {strides = array<i32>} : memref<1x512xf32, #tpu.memory_space<vmem>>, vector<1x256xf32>,
    %c3 = arith.constant 3 : index
    %21 = memref.load %arg2[%c3] : memref<8xf32, #tpu.memory_space<smem>>
    %22 = vector.broadcast %21 : f32 to vector<1x256xf32>
    %23 = arith.mulf %2, %22 : vector<1x256xf32>
    %c4 = arith.constant 4 : index
    %24 = memref.load %arg2[%c4] : memref<8xf32, #tpu.memory_space<smem>>
    %25 = vector.broadcast %24 : f32 to vector<1x256xf32>
    %26 = arith.mulf %3, %25 : vector<1x256xf32>
    %27 = arith.addf %23, %26 : vector<1x256xf32>
    %c5 = arith.constant 5 : index
    %28 = memref.load %arg2[%c5] : memref<8xf32, #tpu.memory_space<smem>>
    %29 = vector.broadcast %28 : f32 to vector<1x256xf32>
    %30 = arith.mulf %4, %29 : vector<1x256xf32>
    %31 = arith.addf %27, %30 : vector<1x256xf32>
    %c7 = arith.constant 7 : index
    %32 = memref.load %arg2[%c7] : memref<8xf32, #tpu.memory_space<smem>>
    %33 = vector.broadcast %32 : f32 to vector<1x256xf32>
    %34 = arith.addf %31, %33 : vector<1x256xf32>
    %35 = math.tanh %34 : vector<1x256xf32>
    %c0_4 = arith.constant 0 : index
    %c256 = arith.constant 256 : index
    %36 = vector.load %arg3[%c0_4, %c256] : memref<1x512xf32, #tpu.memory_space<vmem>>, vector<1x256xf32>
    tpu.vector_store %arg3[%c0_4, %c256], %35 {strides = array<i32>} : memref<1x512xf32, #tpu.memory_space<vmem>>, vector<1x256xf32>,
    return
  }
  func.func @transform_0(%arg0: i32) -> (i32, i32) {
    %c0_i32 = arith.constant 0 : i32
    %c0_i32_0 = arith.constant 0 : i32
    return %arg0, %c0_i32 : i32, i32
  }
  func.func @transform_1(%arg0: i32) -> i32 {
    %c0_i32 = arith.constant 0 : i32
    %c0_i32_0 = arith.constant 0 : i32
    return %c0_i32 : i32
  }
  func.func @transform_2(%arg0: i32) -> (i32, i32) {
    %c0_i32 = arith.constant 0 : i32
    %c0_i32_0 = arith.constant 0 : i32
    return %arg0, %c0_i32 : i32, i32
  }
}

</mosaic_0001>

<llo_original>
// kernel: tpu_custom_call.1
$region0: #{tpu_custom_call.1}
  #allocation0 [shape = 'u32[]', space=smem, size = 0x4, offset = 0x4, fixed_abs, tag = 'smem constant byte address 0x4 - core index']
  #allocation1 [shape = 'u32[144,128]{1,0:T(1,128)}', space=vmem, size = 0x12000, scoped, tag = 'internal scratch']
  %s0 = inlined_call_operand.hbm [shape: f32[1,128], index: 0, kind: input, shape index: {}]
  %s1 = inlined_call_operand.vmem [shape: f32[8], index: 1, kind: input, shape index: {}]
  %s2 = inlined_call_operand.hbm [shape: f32[1,512], index: 2, kind: output, shape index: {}]
  %s3 = sld [smem:[#allocation0]]
  $region26: #{tpu_custom_call.1} parent=0
    _
  %s5 = ssub.s32 1, %s3
  %s6 = scalar_select 0, %s5, %s3
  $region1: #{tpu_custom_call.1} parent=0
    #allocation2 [shape = 'u8[512]{0}', space=vmem, size = 0x400, scoped, tag = 'input window, operand 0, single buffered']
    #allocation3 [shape = 's32[1]{0}', space=sflag, size = 0x4, scoped, tag = 'scoped memory for tpu_custom_call.1']
    #allocation4 [shape = 's32[1]{0}', space=sflag, size = 0x4, scoped, tag = 'scoped memory for tpu_custom_call.1']
    #allocation5 [shape = 's32[1]{0}', space=sflag, size = 0x4, scoped, tag = 'scoped memory for tpu_custom_call.1']
    #allocation6 [shape = 'u8[512]{0}', space=smem, size = 0x200, scoped, tag = 'input window, operand 1, single buffered']
    #allocation7 [shape = 'u8[2048]{0}', space=vmem, size = 0x800, scoped, tag = 'output window, operand 0, single buffered']
    %7 = vsyncpa [#allocation3], 0
    %8 = vsyncpa [#allocation5], 0
    %9 = vsyncpa [#allocation4], 0
    // Predicated region
    $region2: #{tpu_custom_call.1} parent=1 // pred_check
      _
    $region3: #{tpu_custom_call.1} parent=1 // pred_check_branch
      %11 = sbr.rel (0) target = $region5
    $region4: #{tpu_custom_call.1} parent=1 // pred_region
      %s13 = ssub.s32 16, 16
      %14 = vsyncadd [#allocation3], %s13
      %s16 = sshll.u32 [#allocation2], 4
      %s17 = int_to_ptr.vmem [resolvable:$true] %s16
      %19 = dma.hbm_to_vmem [thread:$0]  %s0, 16, %s17, [#allocation3]
    $region5: #{tpu_custom_call.1} parent=1 // pred_fallthru
      _
    // Predicated region
    $region6: #{tpu_custom_call.1} parent=1 // pred_check
      _
    $region7: #{tpu_custom_call.1} parent=1 // pred_check_branch
      %21 = sbr.rel (0) target = $region9
    $region8: #{tpu_custom_call.1} parent=1 // pred_region
      %s23 = ssub.s32 16, 16
      %24 = vsyncadd [#allocation5], %s23
      %s26 = sshll.u32 %s1, 4
      %s27 = int_to_ptr.vmem [resolvable:$true] %s26
      %29 = dma.vmem_to_smem %s27, 16, [#allocation6], [#allocation5]
    $region9: #{tpu_custom_call.1} parent=1 // pred_fallthru
      _
    // Predicated region
    $region10: #{tpu_custom_call.1} parent=1 // pred_check
      _
    $region11: #{tpu_custom_call.1} parent=1 // pred_check_branch
      %31 = sbr.rel (0) target = $region13
    $region12: #{tpu_custom_call.1} parent=1 // pred_region
      %32 = dma.done [#allocation3], 16
    $region13: #{tpu_custom_call.1} parent=1 // pred_fallthru
      _
    // Predicated region
    $region14: #{tpu_custom_call.1} parent=1 // pred_check
      _
    $region15: #{tpu_custom_call.1} parent=1 // pred_check_branch
      %34 = sbr.rel (0) target = $region17
    $region16: #{tpu_custom_call.1} parent=1 // pred_region
      %35 = dma.done [#allocation5], 16
    $region17: #{tpu_custom_call.1} parent=1 // pred_fallthru
      _
    %36 = sfence
    %v37 = vld [vmem:[#allocation2] sm:$0x1]
    %38 = vrot.lane.b32.xlu0 %v37, 16
    %v39 = vpop.permute.xlu0 %38
    %40 = vrot.lane.b32.xlu0 0.0, 16
    %v41 = vpop.permute.xlu0 %40
    %v42 = vlaneseq
    %v43 = vand.u32 %v42, 127
    %vm44 = vcmp.lt.s32.totalorder %v43, 16
    %v45 = vsel %vm44, %v39, %v41
    %v46 = vsel %vm44, %v41, %v39
    %47 = vrot.lane.b32.xlu0 %v37, 32
    %v48 = vpop.permute.xlu0 %47
    %49 = vrot.lane.b32.xlu0 0.0, 32
    %v50 = vpop.permute.xlu0 %49
    %vm51 = vcmp.lt.s32.totalorder %v43, 32
    %v52 = vsel %vm51, %v48, %v50
    %v53 = vsel %vm51, %v50, %v48
    %s54 = sld [smem:[#allocation6]]
    %v55 = vstv %s54
    %v56 = vmul.f32 %v37, %v55
    %v57 = vmul.f32 %v55, 0.0
    %s58 = sld [smem:[#allocation6 + $0x1]]
    %v59 = vstv %s58
    %v60 = vmul.f32 %v46, %v59
    %v61 = vmul.f32 %v45, %v59
    %v62 = vadd.f32 %v56, %v60
    %v63 = vadd.f32 %v57, %v61
    %s64 = sld [smem:[#allocation6 + $0x2]]
    %v65 = vstv %s64
    %v66 = vmul.f32 %v53, %v65
    %v67 = vmul.f32 %v52, %v65
    %v68 = vadd.f32 %v62, %v66
    %v69 = vadd.f32 %v63, %v67
    %s70 = sld [smem:[#allocation6 + $0x6]]
    %v71 = vstv %s70
    %v72 = vadd.f32 %v68, %v71
    %v73 = vadd.f32 %v69, %v71
    %v74 = vtanh.pop %v72
    %v75 = vtanh.pop %v73
    %v78 = vcombine.low %v74, %v75
    %v80 = vunpack.c.l.s4 1966171168
    %v81 = vunpack.c.0.s8 %v80
    %v82 = vlaneseq
    %v83 = vshrl.u32 %v82, 7
    %v84 = vsub.s32 %v81, %v83
    %v85 = vrot.slane %v78, %v84
    %v87 = vunpack.c.l.s4 1966171168
    %v88 = vunpack.c.0.s8 %v87
    %v89 = vlaneseq
    %v90 = vshrl.u32 %v89, 7
    %v91 = vsub.s32 %v88, %v90
    %v92 = vrot.slane %v85, %v91
    %v94 = vlaneseq
    %vm95 = vcmp.ge.s32.totalorder %v94, 0
    %vm96 = vcmp.lt.s32.totalorder %v94, 256
    %vm97 = vmand %vm95, %vm96
    %98 = vst.msk [vmem:[#allocation7] sm:$0x3] %vm97, %v92
    %s99 = sld [smem:[#allocation6 + $0x3]]
    %v100 = vstv %s99
    %v101 = vmul.f32 %v37, %v100
    %v102 = vmul.f32 %v100, 0.0
    %s103 = sld [smem:[#allocation6 + $0x4]]
    %v104 = vstv %s103
    %v105 = vmul.f32 %v46, %v104
    %v106 = vmul.f32 %v45, %v104
    %v107 = vadd.f32 %v101, %v105
    %v108 = vadd.f32 %v102, %v106
    %s109 = sld [smem:[#allocation6 + $0x5]]
    %v110 = vstv %s109
    %v111 = vmul.f32 %v53, %v110
    %v112 = vmul.f32 %v52, %v110
    %v113 = vadd.f32 %v107, %v111
    %v114 = vadd.f32 %v108, %v112
    %s115 = sld [smem:[#allocation6 + $0x7]]
    %v116 = vstv %s115
    %v117 = vadd.f32 %v113, %v116
    %v118 = vadd.f32 %v114, %v116
    %v119 = vtanh.pop %v117
    %v120 = vtanh.pop %v118
    %v123 = vcombine.low %v119, %v120
    %v125 = vunpack.c.l.s4 1966171168
    %v126 = vunpack.c.0.s8 %v125
    %v127 = vlaneseq
    %v128 = vshrl.u32 %v127, 7
    %v129 = vsub.s32 %v126, %v128
    %v130 = vrot.slane %v123, %v129
    %v132 = vunpack.c.l.s4 1966171168
    %v133 = vunpack.c.0.s8 %v132
    %v134 = vlaneseq
    %v135 = vshrl.u32 %v134, 7
    %v136 = vsub.s32 %v133, %v135
    %v137 = vrot.slane %v130, %v136
    %139 = vst.msk [vmem:[#allocation7 + $0x2] sm:$0x3] %vm97, %v137
    // Predicated region
    $region18: #{tpu_custom_call.1} parent=1 // pred_check
      _
    $region19: #{tpu_custom_call.1} parent=1 // pred_check_branch
      %141 = sbr.rel (0) target = $region21
    $region20: #{tpu_custom_call.1} parent=1 // pred_region
      %s143 = ssub.s32 64, 64
      %144 = vsyncadd [#allocation4], %s143
      %s146 = sshll.u32 [#allocation7], 4
      %s147 = int_to_ptr.vmem [resolvable:$true] %s146
      %149 = dma.vmem_to_hbm [thread:$0]  %s147, 64, %s2, [#allocation4]
    $region21: #{tpu_custom_call.1} parent=1 // pred_fallthru
      _
    // Predicated region
    $region22: #{tpu_custom_call.1} parent=1 // pred_check
      _
    $region23: #{tpu_custom_call.1} parent=1 // pred_check_branch
      %151 = sbr.rel (0) target = $region25
    $region24: #{tpu_custom_call.1} parent=1 // pred_region
      %152 = dma.done [#allocation4], 64
    $region25: #{tpu_custom_call.1} parent=1 // pred_fallthru
      _
    %153 = vsyncpa [#allocation3], 1
    %154 = vsyncpa [#allocation4], 1
    %155 = vsyncpa [#allocation5], 1

</llo_original>
